<compile_context>
chip_gen: v7x
topology: tpu7x:2x2x1
jax: 0.10.0
libtpu: 0.0.40
codegen_flags: <defaults>
</compile_context>

<pallas_src>
import jax
import jax.numpy as jnp
from jax.experimental import pallas as pl
from jax.experimental.pallas import tpu as pltpu

H1, H2 = 256, 512        # hidden sizes from the PyTorch module
LANE = 128               # TPU lane width (output padding target)
SUBLANE = 8              # f32 sublane granule
BN_EPS = 1e-5            # nn.BatchNorm1d default eps


def _round_up(n, m):
    return ((n + m - 1) // m) * m


# --------------------------------------------------------------------------
# Kernel: whole forward pass for one batch tile, entirely in VMEM.
# --------------------------------------------------------------------------
def meta_learner_kernel(x_ref,
                        w1_ref, c1_ref,
                        w2_ref, c2_ref,
                        w3_ref, b3_ref,
                        o_ref):
    """BN (eval mode) already folded into (w1, c1) / (w2, c2) by the wrapper."""
    x = x_ref[...]                                                   # bf16 (tile, in)

    # fc1 (+ folded bn1) + relu; accumulate f32, re-quantize to bf16 for MXU.
    h1 = jnp.dot(x, w1_ref[...], preferred_element_type=jnp.float32) + c1_ref[...]
    h1 = jnp.maximum(h1, 0.0).astype(jnp.bfloat16)

    # TODO(synk): training-mode dropout(p=0.6) not implemented (identity in eval).

    # fc2 (+ folded bn2) + relu
    h2 = jnp.dot(h1, w2_ref[...], preferred_element_type=jnp.float32) + c2_ref[...]
    h2 = jnp.maximum(h2, 0.0).astype(jnp.bfloat16)

    # fc3 -> lane-dense padded output slab (sliced to out_dim in the wrapper)
    o_ref[...] = jnp.dot(h2, w3_ref[...], preferred_element_type=jnp.float32) + b3_ref[...]


# --------------------------------------------------------------------------
# Parameter preparation (BN folding, bf16 cast, lane padding)
# --------------------------------------------------------------------------
def fold_params(p):
    """Fold eval-mode BatchNorm into fc1/fc2, cast weights to bf16, pad dims."""
    g1, be1, rm1, rv1 = p["bn1"]
    g2, be2, rm2, rv2 = p["bn2"]
    s1 = g1 / jnp.sqrt(rv1 + BN_EPS)
    s2 = g2 / jnp.sqrt(rv2 + BN_EPS)

    in_dim = p["w1"].shape[1]
    in_pad = _round_up(in_dim, SUBLANE)         # keep w1 sublane-aligned for bf16

    # PyTorch Linear stores (out, in); transpose to (in, out), column-scale by s.
    w1f = jnp.zeros((in_pad, H1), jnp.float32).at[:in_dim, :].set(p["w1"].T * s1[None, :])
    w1f = w1f.astype(jnp.bfloat16)                                           # (in_pad, H1)
    c1 = (((p["b1"] - rm1) * s1 + be1)[None, :]).astype(jnp.float32)         # (1, H1)
    w2f = (p["w2"].T * s2[None, :]).astype(jnp.bfloat16)                     # (H1, H2)
    c2 = (((p["b2"] - rm2) * s2 + be2)[None, :]).astype(jnp.float32)         # (1, H2)

    out_dim = p["w3"].shape[0]
    out_pad = _round_up(out_dim, LANE)
    w3f = jnp.zeros((H2, out_pad), jnp.float32).at[:, :out_dim].set(p["w3"].T)
    w3f = w3f.astype(jnp.bfloat16)                                           # (H2, 128k)
    b3f = jnp.zeros((1, out_pad), jnp.float32).at[:, :out_dim].set(p["b3"])  # (1, 128k)

    return (w1f, c1, w2f, c2, w3f, b3f), out_dim, in_dim, in_pad


# --------------------------------------------------------------------------
# Wrapper
# --------------------------------------------------------------------------
def meta_learner_forward(x, kernel_params, out_dim, in_pad, *, batch_tile=None):
    w1f, c1, w2f, c2, w3f, b3f = kernel_params
    B, input_dim = x.shape
    out_pad = w3f.shape[1]

    # Batch tile: biggest tile that keeps per-step overhead amortized while
    # staying a multiple of the MXU M dimension; tiny batches round to sublanes.
    if batch_tile is None:
        if B >= 512:
            batch_tile = 512
        elif B >= 256:
            batch_tile = 256
        elif B >= 128:
            batch_tile = 128
        else:
            batch_tile = _round_up(B, SUBLANE)

    # Ragged batch / input_dim handled by zero padding (no asserts).
    Bp = _round_up(B, batch_tile)
    if Bp != B or in_pad != input_dim:
        x = jnp.pad(x, ((0, Bp - B), (0, in_pad - input_dim)))
    x = x.astype(jnp.bfloat16)

    grid = (Bp // batch_tile,)

    def const(shape):
        # Grid-invariant (weight/bias) block: same full block every step ->
        # stays resident in VMEM, DMA'd once.
        return pl.BlockSpec(shape, lambda i, _n=len(shape): (0,) * _n)

    in_specs = [
        pl.BlockSpec((batch_tile, in_pad), lambda i: (i, 0)),   # x tile (streams)
        const((in_pad, H1)), const((1, H1)),
        const((H1, H2)), const((1, H2)),
        const((H2, out_pad)), const((1, out_pad)),
    ]
    out_spec = pl.BlockSpec((batch_tile, out_pad), lambda i: (i, 0))

    out = pl.pallas_call(
        meta_learner_kernel,
        out_shape=jax.ShapeDtypeStruct((Bp, out_pad), jnp.float32),
        grid=grid,
        in_specs=in_specs,
        out_specs=out_spec,
        compiler_params=pltpu.CompilerParams(
            dimension_semantics=("parallel",),   # megacore / v7x 2-TC sharding
            vmem_limit_bytes=64 << 20),
    )(x, w1f, c1, w2f, c2, w3f, b3f)

    return out[:B, :out_dim]


# --------------------------------------------------------------------------
# PyTorch-equivalent parameter init + plain-JAX reference
# --------------------------------------------------------------------------
def init_params(key, input_dim, output_dim):
    """Parameters mirroring the PyTorch module (Linear stores (out,in))."""
    ks = jax.random.split(key, 14)

    def linear(kw, kb, fan_in, fan_out):
        bound = 1.0 / jnp.sqrt(fan_in)
        w = jax.random.uniform(kw, (fan_out, fan_in), jnp.float32, -bound, bound)
        b = jax.random.uniform(kb, (fan_out,), jnp.float32, -bound, bound)
        return w, b

    w1, b1 = linear(ks[0], ks[1], input_dim, H1)
    w2, b2 = linear(ks[2], ks[3], H1, H2)
    w3, b3 = linear(ks[4], ks[5], H2, output_dim)

    def bn_stats(kg, kb_, km, kv, n):
        g = 1.0 + 0.1 * jax.random.normal(kg, (n,), jnp.float32)
        be = 0.05 * jax.random.normal(kb_, (n,), jnp.float32)
        rm = 0.1 * jax.random.normal(km, (n,), jnp.float32)
        rv = 1.0 + 0.1 * jnp.abs(jax.random.normal(kv, (n,), jnp.float32))
        return (g, be, rm, rv)

    return dict(
        w1=w1, b1=b1, bn1=bn_stats(ks[6], ks[7], ks[8], ks[9], H1),
        w2=w2, b2=b2, bn2=bn_stats(ks[10], ks[11], ks[12], ks[13], H2),
        w3=w3, b3=b3,
    )


def reference_forward(x, p):
    """Plain-JAX f32 reference of the eval-mode PyTorch forward."""
    def bn(h, stats):
        g, be, rm, rv = stats
        return (h - rm) / jnp.sqrt(rv + BN_EPS) * g + be

    h = jnp.maximum(bn(x @ p["w1"].T + p["b1"], p["bn1"]), 0.0)
    # dropout(p=0.6) is identity in eval mode
    h = jnp.maximum(bn(h @ p["w2"].T + p["b2"], p["bn2"]), 0.0)
    return h @ p["w3"].T + p["b3"]


if __name__ == "__main__":
    key = jax.random.PRNGKey(0)
    k_x, k_p = jax.random.split(key)

    input_dim, output_dim, batch = 16, 8, 8
    x = jax.random.normal(k_x, (batch, input_dim), jnp.float32)

    params = init_params(k_p, input_dim, output_dim)
    kernel_params, out_dim, in_dim, in_pad = fold_params(params)

    out = meta_learner_forward(x, kernel_params, out_dim, in_pad)
    out = jax.block_until_ready(out)

    ref = reference_forward(x, params)
    assert out.shape == (batch, output_dim)
    # bf16 weights/activations on the MXU -> loosened tolerance vs f32 reference.
    max_err = float(jnp.max(jnp.abs(out - ref)))
    assert jnp.allclose(out, ref, atol=3e-2, rtol=3e-2), f"mismatch vs reference (max abs err {max_err})"

    print("KERNEL_OK")
</pallas_src>

<mosaic_0001>
module attributes {stable_mosaic.version = 11 : i64} {
  func.func @meta_learner_kernel(%arg0: i32, %arg1: memref<8x16xbf16, #tpu.memory_space<vmem>>, %arg2: memref<16x256xbf16, #tpu.memory_space<vmem>>, %arg3: memref<1x256xf32, #tpu.memory_space<vmem>>, %arg4: memref<256x512xbf16, #tpu.memory_space<vmem>>, %arg5: memref<1x512xf32, #tpu.memory_space<vmem>>, %arg6: memref<512x128xbf16, #tpu.memory_space<vmem>>, %arg7: memref<1x128xf32, #tpu.memory_space<vmem>>, %arg8: memref<8x128xf32, #tpu.memory_space<vmem>>) attributes {dimension_semantics = [#tpu.dimension_semantics<parallel>], iteration_bounds = array<i64: 1>, scalar_prefetch = 0 : i64, scratch_operands = 0 : i64, tpu.core_type = #tpu.core_type<tc>, window_params = [{transform_indices = @transform_0, window_bounds = array<i64: 8, 16>}, {pipeline_mode = #tpu.pipeline_mode<synchronous>, transform_indices = @transform_1, window_bounds = array<i64: 16, 256>}, {pipeline_mode = #tpu.pipeline_mode<synchronous>, transform_indices = @transform_2, window_bounds = array<i64: 1, 256>}, {pipeline_mode = #tpu.pipeline_mode<synchronous>, transform_indices = @transform_3, window_bounds = array<i64: 256, 512>}, {pipeline_mode = #tpu.pipeline_mode<synchronous>, transform_indices = @transform_4, window_bounds = array<i64: 1, 512>}, {pipeline_mode = #tpu.pipeline_mode<synchronous>, transform_indices = @transform_5, window_bounds = array<i64: 512, 128>}, {pipeline_mode = #tpu.pipeline_mode<synchronous>, transform_indices = @transform_6, window_bounds = array<i64: 1, 128>}, {transform_indices = @transform_7, window_bounds = array<i64: 8, 128>}]} {
    %c0 = arith.constant 0 : index
    %c0_0 = arith.constant 0 : index
    %0 = vector.load %arg1[%c0, %c0_0] : memref<8x16xbf16, #tpu.memory_space<vmem>>, vector<8x16xbf16>
    %c0_1 = arith.constant 0 : index
    %c0_2 = arith.constant 0 : index
    %1 = vector.load %arg2[%c0_1, %c0_2] : memref<16x256xbf16, #tpu.memory_space<vmem>>, vector<16x256xbf16>
    %cst = arith.constant dense<0.000000e+00> : vector<8x256xf32>
    %2 = tpu.matmul %0, %1, %cst {dimension_numbers = #tpu.dot_dimension_numbers<[1], [0], [0], [1], [0, 0, 1, 1], [], []>} : vector<8x16xbf16>, vector<16x256xbf16>, vector<8x256xf32> -> vector<8x256xf32>
    %c0_3 = arith.constant 0 : index
    %c0_4 = arith.constant 0 : index
    %3 = vector.load %arg3[%c0_3, %c0_4] : memref<1x256xf32, #tpu.memory_space<vmem>>, vector<1x256xf32>
    %4 = vector.broadcast %3 : vector<1x256xf32> to vector<8x256xf32>
    %5 = arith.addf %2, %4 : vector<8x256xf32>
    %cst_5 = arith.constant 0.000000e+00 : f32
    %6 = vector.broadcast %cst_5 : f32 to vector<8x256xf32>
    %7 = arith.maximumf %5, %6 : vector<8x256xf32>
    %8 = arith.truncf %7 : vector<8x256xf32> to vector<8x256xbf16>
    %c0_6 = arith.constant 0 : index
    %c0_7 = arith.constant 0 : index
    %9 = vector.load %arg4[%c0_6, %c0_7] : memref<256x512xbf16, #tpu.memory_space<vmem>>, vector<256x512xbf16>
    %cst_8 = arith.constant dense<0.000000e+00> : vector<8x512xf32>
    %10 = tpu.matmul %8, %9, %cst_8 {dimension_numbers = #tpu.dot_dimension_numbers<[1], [0], [0], [1], [0, 0, 1, 1], [], []>} : vector<8x256xbf16>, vector<256x512xbf16>, vector<8x512xf32> -> vector<8x512xf32>
    %c0_9 = arith.constant 0 : index
    %c0_10 = arith.constant 0 : index
    %11 = vector.load %arg5[%c0_9, %c0_10] : memref<1x512xf32, #tpu.memory_space<vmem>>, vector<1x512xf32>
    %12 = vector.broadcast %11 : vector<1x512xf32> to vector<8x512xf32>
    %13 = arith.addf %10, %12 : vector<8x512xf32>
    %cst_11 = arith.constant 0.000000e+00 : f32
    %14 = vector.broadcast %cst_11 : f32 to vector<8x512xf32>
    %15 = arith.maximumf %13, %14 : vector<8x512xf32>
    %16 = arith.truncf %15 : vector<8x512xf32> to vector<8x512xbf16>
    %c0_12 = arith.constant 0 : index
    %c0_13 = arith.constant 0 : index
    %17 = vector.load %arg6[%c0_12, %c0_13] : memref<512x128xbf16, #tpu.memory_space<vmem>>, vector<512x128xbf16>
    %cst_14 = arith.constant dense<0.000000e+00> : vector<8x128xf32>
    %18 = tpu.matmul %16, %17, %cst_14 {dimension_numbers = #tpu.dot_dimension_numbers<[1], [0], [0], [1], [0, 0, 1, 1], [], []>} : vector<8x512xbf16>, vector<512x128xbf16>, vector<8x128xf32> -> vector<8x128xf32>
    %c0_15 = arith.constant 0 : index
    %c0_16 = arith.constant 0 : index
    %19 = vector.load %arg7[%c0_15, %c0_16] : memref<1x128xf32, #tpu.memory_space<vmem>>, vector<1x128xf32>
    %20 = vector.broadcast %19 : vector<1x128xf32> to vector<8x128xf32>
    %21 = arith.addf %18, %20 : vector<8x128xf32>
    %c0_17 = arith.constant 0 : index
    %c0_18 = arith.constant 0 : index
    %22 = vector.load %arg8[%c0_17, %c0_18] : memref<8x128xf32, #tpu.memory_space<vmem>>, vector<8x128xf32>
    tpu.vector_store %arg8[%c0_17, %c0_18], %21 {strides = array<i32>} : memref<8x128xf32, #tpu.memory_space<vmem>>, vector<8x128xf32>,
    return
  }
  func.func @transform_0(%arg0: i32) -> (i32, i32) {
    %c0_i32 = arith.constant 0 : i32
    %c0_i32_0 = arith.constant 0 : i32
    return %arg0, %c0_i32 : i32, i32
  }
  func.func @transform_1(%arg0: i32) -> (i32, i32) {
    %c0_i32 = arith.constant 0 : i32
    %c0_i32_0 = arith.constant 0 : i32
    %c0_i32_1 = arith.constant 0 : i32
    return %c0_i32, %c0_i32_0 : i32, i32
  }
  func.func @transform_2(%arg0: i32) -> (i32, i32) {
    %c0_i32 = arith.constant 0 : i32
    %c0_i32_0 = arith.constant 0 : i32
    %c0_i32_1 = arith.constant 0 : i32
    return %c0_i32, %c0_i32_0 : i32, i32
  }
  func.func @transform_3(%arg0: i32) -> (i32, i32) {
    %c0_i32 = arith.constant 0 : i32
    %c0_i32_0 = arith.constant 0 : i32
    %c0_i32_1 = arith.constant 0 : i32
    return %c0_i32, %c0_i32_0 : i32, i32
  }
  func.func @transform_4(%arg0: i32) -> (i32, i32) {
    %c0_i32 = arith.constant 0 : i32
    %c0_i32_0 = arith.constant 0 : i32
    %c0_i32_1 = arith.constant 0 : i32
    return %c0_i32, %c0_i32_0 : i32, i32
  }
  func.func @transform_5(%arg0: i32) -> (i32, i32) {
    %c0_i32 = arith.constant 0 : i32
    %c0_i32_0 = arith.constant 0 : i32
    %c0_i32_1 = arith.constant 0 : i32
    return %c0_i32, %c0_i32_0 : i32, i32
  }
  func.func @transform_6(%arg0: i32) -> (i32, i32) {
    %c0_i32 = arith.constant 0 : i32
    %c0_i32_0 = arith.constant 0 : i32
    %c0_i32_1 = arith.constant 0 : i32
    return %c0_i32, %c0_i32_0 : i32, i32
  }
  func.func @transform_7(%arg0: i32) -> (i32, i32) {
    %c0_i32 = arith.constant 0 : i32
    %c0_i32_0 = arith.constant 0 : i32
    return %arg0, %c0_i32 : i32, i32
  }
}

</mosaic_0001>

<llo_original>
// kernel: tpu_custom_call.1
$region0: #{tpu_custom_call.1}
  #allocation0 [shape = 'u32[]', space=smem, size = 0x4, offset = 0x4, fixed_abs, tag = 'smem constant byte address 0x4 - core index']
  #allocation1 [shape = 'u32[144,128]{1,0:T(1,128)}', space=vmem, size = 0x12000, scoped, tag = 'internal scratch']
  %s0 = inlined_call_operand.hbm [shape: bf16[8,16], index: 0, kind: input, shape index: {}]
  %s1 = inlined_call_operand.hbm [shape: bf16[16,256], index: 1, kind: input, shape index: {}]
  %s2 = inlined_call_operand.hbm [shape: f32[1,256], index: 2, kind: input, shape index: {}]
  %s3 = inlined_call_operand.hbm [shape: bf16[256,512], index: 3, kind: input, shape index: {}]
  %s4 = inlined_call_operand.hbm [shape: f32[1,512], index: 4, kind: input, shape index: {}]
  %s5 = inlined_call_operand.hbm [shape: bf16[512,128], index: 5, kind: input, shape index: {}]
  %s6 = inlined_call_operand.hbm [shape: f32[1,128], index: 6, kind: input, shape index: {}]
  %s7 = inlined_call_operand.hbm [shape: f32[8,128], index: 7, kind: output, shape index: {}]
  %s8 = sld [smem:[#allocation0]]
  $region66: #{tpu_custom_call.1} parent=0
    _
  %s10 = ssub.s32 1, %s8
  %s11 = scalar_select 0, %s10, %s8
  $region1: #{tpu_custom_call.1} parent=0
    #allocation2 [shape = 'u8[2048]{0}', space=vmem, size = 0x800, scoped, tag = 'input window, operand 0, single buffered']
    #allocation3 [shape = 's32[1]{0}', space=sflag, size = 0x4, scoped, tag = 'scoped memory for tpu_custom_call.1']
    #allocation4 [shape = 's32[1]{0}', space=sflag, size = 0x4, scoped, tag = 'scoped memory for tpu_custom_call.1']
    #allocation5 [shape = 'u8[8192]{0}', space=vmem, size = 0x2000, scoped, tag = 'input window, operand 1, single buffered']
    #allocation6 [shape = 's32[1]{0}', space=sflag, size = 0x4, scoped, tag = 'scoped memory for tpu_custom_call.1']
    #allocation7 [shape = 'u8[1024]{0}', space=vmem, size = 0x400, scoped, tag = 'input window, operand 2, single buffered']
    #allocation8 [shape = 'u8[262144]{0}', space=vmem, size = 0x40000, scoped, tag = 'input window, operand 3, single buffered']
    #allocation9 [shape = 's32[1]{0}', space=sflag, size = 0x4, scoped, tag = 'scoped memory for tpu_custom_call.1']
    #allocation10 [shape = 'u8[2048]{0}', space=vmem, size = 0x800, scoped, tag = 'input window, operand 4, single buffered']
    #allocation11 [shape = 'u8[131072]{0}', space=vmem, size = 0x20000, scoped, tag = 'input window, operand 5, single buffered']
    #allocation12 [shape = 's32[1]{0}', space=sflag, size = 0x4, scoped, tag = 'scoped memory for tpu_custom_call.1']
    #allocation13 [shape = 'u8[512]{0}', space=vmem, size = 0x400, scoped, tag = 'input window, operand 6, single buffered']
    #allocation14 [shape = 'u8[4096]{0}', space=vmem, size = 0x1000, scoped, tag = 'output window, operand 0, single buffered']
    %12 = vsyncpa [#allocation3], 0
    %13 = vsyncpa [#allocation6], 0
    %14 = vsyncpa [#allocation9], 0
    %15 = vsyncpa [#allocation12], 0
    %16 = vsyncpa [#allocation4], 0
    // Predicated region
    $region2: #{tpu_custom_call.1} parent=1 // pred_check
      _
    $region3: #{tpu_custom_call.1} parent=1 // pred_check_branch
      %18 = sbr.rel (0) target = $region5
    $region4: #{tpu_custom_call.1} parent=1 // pred_region
      %s20 = ssub.s32 64, 64
      %21 = vsyncadd [#allocation3], %s20
      %s23 = sshll.u32 [#allocation2], 4
      %s24 = int_to_ptr.vmem [resolvable:$true] %s23
      %26 = dma.hbm_to_vmem [thread:$0]  %s0, 64, %s24, [#allocation3]
    $region5: #{tpu_custom_call.1} parent=1 // pred_fallthru
      _
    // Predicated region
    $region6: #{tpu_custom_call.1} parent=1 // pred_check
      _
    $region7: #{tpu_custom_call.1} parent=1 // pred_check_branch
      %28 = sbr.rel (0) target = $region9
    $region8: #{tpu_custom_call.1} parent=1 // pred_region
      %s30 = ssub.s32 256, 256
      %31 = vsyncadd [#allocation6], %s30
      %s32 = sshll.u32 [#allocation5], 4
      %s33 = int_to_ptr.vmem [resolvable:$true] %s32
      %38 = dma.hbm_to_vmem [thread:$0]  %s1, 256, %s33, [#allocation6], 128, 128, 8
    $region9: #{tpu_custom_call.1} parent=1 // pred_fallthru
      _
    // Predicated region
    $region10: #{tpu_custom_call.1} parent=1 // pred_check
      _
    $region11: #{tpu_custom_call.1} parent=1 // pred_check_branch
      %40 = sbr.rel (0) target = $region13
    $region12: #{tpu_custom_call.1} parent=1 // pred_region
      %s42 = ssub.s32 32, 32
      %43 = vsyncadd [#allocation6], %s42
      %s45 = sshll.u32 [#allocation7], 4
      %s46 = int_to_ptr.vmem [resolvable:$true] %s45
      %48 = dma.hbm_to_vmem [thread:$0]  %s2, 32, %s46, [#allocation6]
    $region13: #{tpu_custom_call.1} parent=1 // pred_fallthru
      _
    // Predicated region
    $region14: #{tpu_custom_call.1} parent=1 // pred_check
      _
    $region15: #{tpu_custom_call.1} parent=1 // pred_check_branch
      %50 = sbr.rel (0) target = $region17
    $region16: #{tpu_custom_call.1} parent=1 // pred_region
      %s52 = ssub.s32 8192, 8192
      %53 = vsyncadd [#allocation9], %s52
      %s54 = sshll.u32 [#allocation8], 4
      %s55 = int_to_ptr.vmem [resolvable:$true] %s54
      %60 = dma.hbm_to_vmem [thread:$0]  %s3, 8192, %s55, [#allocation9], 256, 256, 16
    $region17: #{tpu_custom_call.1} parent=1 // pred_fallthru
      _
    // Predicated region
    $region18: #{tpu_custom_call.1} parent=1 // pred_check
      _
    $region19: #{tpu_custom_call.1} parent=1 // pred_check_branch
      %62 = sbr.rel (0) target = $region21
    $region20: #{tpu_custom_call.1} parent=1 // pred_region
      %s64 = ssub.s32 64, 64
      %65 = vsyncadd [#allocation9], %s64
      %s67 = sshll.u32 [#allocation10], 4
      %s68 = int_to_ptr.vmem [resolvable:$true] %s67
      %70 = dma.hbm_to_vmem [thread:$0]  %s4, 64, %s68, [#allocation9]
    $region21: #{tpu_custom_call.1} parent=1 // pred_fallthru
      _
    // Predicated region
    $region22: #{tpu_custom_call.1} parent=1 // pred_check
      _
    $region23: #{tpu_custom_call.1} parent=1 // pred_check_branch
      %72 = sbr.rel (0) target = $region25
    $region24: #{tpu_custom_call.1} parent=1 // pred_region
      %s74 = ssub.s32 4096, 4096
      %75 = vsyncadd [#allocation12], %s74
      %s76 = sshll.u32 [#allocation11], 4
      %s77 = int_to_ptr.vmem [resolvable:$true] %s76
      %82 = dma.hbm_to_vmem [thread:$0]  %s5, 4096, %s77, [#allocation12], 64, 64, 4
    $region25: #{tpu_custom_call.1} parent=1 // pred_fallthru
      _
    // Predicated region
    $region26: #{tpu_custom_call.1} parent=1 // pred_check
      _
    $region27: #{tpu_custom_call.1} parent=1 // pred_check_branch
      %84 = sbr.rel (0) target = $region29
    $region28: #{tpu_custom_call.1} parent=1 // pred_region
      %s86 = ssub.s32 16, 16
      %87 = vsyncadd [#allocation12], %s86
      %s89 = sshll.u32 [#allocation13], 4
      %s90 = int_to_ptr.vmem [resolvable:$true] %s89
      %92 = dma.hbm_to_vmem [thread:$0]  %s6, 16, %s90, [#allocation12]
    $region29: #{tpu_custom_call.1} parent=1 // pred_fallthru
      _
    // Predicated region
    $region30: #{tpu_custom_call.1} parent=1 // pred_check
      _
    $region31: #{tpu_custom_call.1} parent=1 // pred_check_branch
      %94 = sbr.rel (0) target = $region33
    $region32: #{tpu_custom_call.1} parent=1 // pred_region
      %95 = dma.done [#allocation3], 64
    $region33: #{tpu_custom_call.1} parent=1 // pred_fallthru
      _
    // Predicated region
    $region34: #{tpu_custom_call.1} parent=1 // pred_check
      _
    $region35: #{tpu_custom_call.1} parent=1 // pred_check_branch
      %97 = sbr.rel (0) target = $region37
    $region36: #{tpu_custom_call.1} parent=1 // pred_region
      %98 = dma.done [#allocation6], 256
    $region37: #{tpu_custom_call.1} parent=1 // pred_fallthru
      _
    // Predicated region
    $region38: #{tpu_custom_call.1} parent=1 // pred_check
      _
    $region39: #{tpu_custom_call.1} parent=1 // pred_check_branch
      %100 = sbr.rel (0) target = $region41
    $region40: #{tpu_custom_call.1} parent=1 // pred_region
      %101 = dma.done [#allocation6], 32
    $region41: #{tpu_custom_call.1} parent=1 // pred_fallthru
      _
    // Predicated region
    $region42: #{tpu_custom_call.1} parent=1 // pred_check
      _
    $region43: #{tpu_custom_call.1} parent=1 // pred_check_branch
      %103 = sbr.rel (0) target = $region45
    $region44: #{tpu_custom_call.1} parent=1 // pred_region
      %104 = dma.done [#allocation9], 8192
    $region45: #{tpu_custom_call.1} parent=1 // pred_fallthru
      _
    // Predicated region
    $region46: #{tpu_custom_call.1} parent=1 // pred_check
      _
    $region47: #{tpu_custom_call.1} parent=1 // pred_check_branch
      %106 = sbr.rel (0) target = $region49
    $region48: #{tpu_custom_call.1} parent=1 // pred_region
      %107 = dma.done [#allocation9], 64
    $region49: #{tpu_custom_call.1} parent=1 // pred_fallthru
      _
    // Predicated region
    $region50: #{tpu_custom_call.1} parent=1 // pred_check
      _
    $region51: #{tpu_custom_call.1} parent=1 // pred_check_branch
      %109 = sbr.rel (0) target = $region53
    $region52: #{tpu_custom_call.1} parent=1 // pred_region
      %110 = dma.done [#allocation12], 4096
    $region53: #{tpu_custom_call.1} parent=1 // pred_fallthru
      _
    // Predicated region
    $region54: #{tpu_custom_call.1} parent=1 // pred_check
      _
    $region55: #{tpu_custom_call.1} parent=1 // pred_check_branch
      %112 = sbr.rel (0) target = $region57
    $region56: #{tpu_custom_call.1} parent=1 // pred_region
      %113 = dma.done [#allocation12], 16
    $region57: #{tpu_custom_call.1} parent=1 // pred_fallthru
      _
    %v115 = vld [vmem:[#allocation2] sm:$0xf]
    %v116 = vld [vmem:[#allocation5] sm:$0xff]
    %v117 = vld [vmem:[#allocation5 + $0x8] sm:$0xff]
    %v118 = vld [vmem:[#allocation7] sm:$0x3]
    %v120 = vlaneseq
    %v121 = vshrl.u32 %v120, 7
    %v122 = vsub.s32 0, %v121
    %v123 = vrot.slane %v118, %v122
    %v124 = vlaneseq
    %v125 = vshrl.u32 %v124, 7
    %v126 = vsub.s32 1, %v125
    %v127 = vrot.slane %v118, %v126
    %v132 = vunpack.c.l.b16 %v116
    %v133 = vunpack.c.h.b16 %v116
    %v134 = vunpack.c.l.b16 %v117
    %v135 = vunpack.c.h.b16 %v117
    %v136 = vpack.c.b16 %v134, %v132
    %v137 = vpack.c.b16 %v135, %v133
    %vm140 = vcmask 130048
    %v142 = vsel %vm140, %v115, 0
    %144 = vmatprep.subr.bf16.mxu0 %v137
    %145 = vmatpush1.bf16.msra.mxu0 %v136
    %146 = vmatprep.subr.bf16.mxu0 0
    %147 = vmatpush1.bf16.msra.mxu0 0
    %148 = vmatprep.subr.bf16.mxu0 0
    %149 = vmatpush1.bf16.msra.mxu0 0
    %150 = vmatprep.subr.bf16.mxu0 0
    %151 = vmatpush1.bf16.msra.mxu0 0
    %152 = vmatprep.subr.bf16.mxu0 0
    %153 = vmatpush1.bf16.msra.mxu0 0
    %154 = vmatprep.subr.bf16.mxu0 0
    %155 = vmatpush1.bf16.msra.mxu0 0
    %156 = vmatprep.subr.bf16.mxu0 0
    %157 = vmatpush1.bf16.msra.mxu0 0
    %158 = vmatprep.subr.bf16.mxu0 0
    %159 = vmatpush1.bf16.msra.mxu0 0
    %160 = vmatprep.subr.bf16.mxu0 0
    %161 = vmatpush1.bf16.msra.mxu0 0
    %162 = vmatprep.subr.bf16.mxu0 0
    %163 = vmatpush1.bf16.msra.mxu0 0
    %164 = vmatprep.subr.bf16.mxu0 0
    %165 = vmatpush1.bf16.msra.mxu0 0
    %166 = vmatprep.subr.bf16.mxu0 0
    %167 = vmatpush1.bf16.msra.mxu0 0
    %168 = vmatprep.subr.bf16.mxu0 0
    %169 = vmatpush1.bf16.msra.mxu0 0
    %170 = vmatprep.subr.bf16.mxu0 0
    %171 = vmatpush1.bf16.msra.mxu0 0
    %172 = vmatprep.subr.bf16.mxu0 0
    %173 = vmatpush1.bf16.msra.mxu0 0
    %174 = vmatprep.subr.bf16.mxu0 0
    %175 = vmatpush1.bf16.msra.mxu0 0
    %176 = vmatprep.mubr.bf16.mxu0 0
    %177 = vmatmul.mubr.bf16.gmra.mrb[0].mxu0 %v142
    %v178 = vpop.f32.mrb[0].mxu0
    %v179 = vadd.f32 %v123, %v178
    %v180 = vpop.f32.mrb[0].mxu0
    %v181 = vadd.f32 %v127, %v180
    %v182 = vpop.f32.mrb[0].mxu0
    %v183 = vpop.f32.mrb[0].mxu0
    %184 = vdwg.mxu0
    %v185 = vmax.f32 %v179, 0.0
    %v186 = vmax.f32 %v181, 0.0
    %v187 = vpack.c.bf16 %v185, %v185
    %v188 = vpack.c.bf16 %v186, %v186
    %v189 = vld [vmem:[#allocation8] sm:$0xff]
    %v190 = vld [vmem:[#allocation8 + $0x8] sm:$0xff]
    %v191 = vld [vmem:[#allocation8 + $0x10] sm:$0xff]
    %v192 = vld [vmem:[#allocation8 + $0x18] sm:$0xff]
    %v193 = vld [vmem:[#allocation8 + $0x20] sm:$0xff]
    %v194 = vld [vmem:[#allocation8 + $0x28] sm:$0xff]
    %v195 = vld [vmem:[#allocation8 + $0x30] sm:$0xff]
    %v196 = vld [vmem:[#allocation8 + $0x38] sm:$0xff]
    %v197 = vld [vmem:[#allocation8 + $0x40] sm:$0xff]
    %v198 = vld [vmem:[#allocation8 + $0x48] sm:$0xff]
    %v199 = vld [vmem:[#allocation8 + $0x50] sm:$0xff]
    %v200 = vld [vmem:[#allocation8 + $0x58] sm:$0xff]
    %v201 = vld [vmem:[#allocation8 + $0x60] sm:$0xff]
    %v202 = vld [vmem:[#allocation8 + $0x68] sm:$0xff]
    %v203 = vld [vmem:[#allocation8 + $0x70] sm:$0xff]
    %v204 = vld [vmem:[#allocation8 + $0x78] sm:$0xff]
    %v205 = vld [vmem:[#allocation8 + $0x80] sm:$0xff]
    %v206 = vld [vmem:[#allocation8 + $0x88] sm:$0xff]
    %v207 = vld [vmem:[#allocation8 + $0x90] sm:$0xff]
    %v208 = vld [vmem:[#allocation8 + $0x98] sm:$0xff]
    %v209 = vld [vmem:[#allocation8 + $0xa0] sm:$0xff]
    %v210 = vld [vmem:[#allocation8 + $0xa8] sm:$0xff]
    %v211 = vld [vmem:[#allocation8 + $0xb0] sm:$0xff]
    %v212 = vld [vmem:[#allocation8 + $0xb8] sm:$0xff]
    %v213 = vld [vmem:[#allocation8 + $0xc0] sm:$0xff]
    %v214 = vld [vmem:[#allocation8 + $0xc8] sm:$0xff]
    %v215 = vld [vmem:[#allocation8 + $0xd0] sm:$0xff]
    %v216 = vld [vmem:[#allocation8 + $0xd8] sm:$0xff]
    %v217 = vld [vmem:[#allocation8 + $0xe0] sm:$0xff]
    %v218 = vld [vmem:[#allocation8 + $0xe8] sm:$0xff]
    %v219 = vld [vmem:[#allocation8 + $0xf0] sm:$0xff]
    %v220 = vld [vmem:[#allocation8 + $0xf8] sm:$0xff]
    %v221 = vld [vmem:[#allocation8 + $0x100] sm:$0xff]
    %v222 = vld [vmem:[#allocation8 + $0x108] sm:$0xff]
    %v223 = vld [vmem:[#allocation8 + $0x110] sm:$0xff]
    %v224 = vld [vmem:[#allocation8 + $0x118] sm:$0xff]
    %v225 = vld [vmem:[#allocation8 + $0x120] sm:$0xff]
    %v226 = vld [vmem:[#allocation8 + $0x128] sm:$0xff]
    %v227 = vld [vmem:[#allocation8 + $0x130] sm:$0xff]
    %v228 = vld [vmem:[#allocation8 + $0x138] sm:$0xff]
    %v229 = vld [vmem:[#allocation8 + $0x140] sm:$0xff]
    %v230 = vld [vmem:[#allocation8 + $0x148] sm:$0xff]
    %v231 = vld [vmem:[#allocation8 + $0x150] sm:$0xff]
    %v232 = vld [vmem:[#allocation8 + $0x158] sm:$0xff]
    %v233 = vld [vmem:[#allocation8 + $0x160] sm:$0xff]
    %v234 = vld [vmem:[#allocation8 + $0x168] sm:$0xff]
    %v235 = vld [vmem:[#allocation8 + $0x170] sm:$0xff]
    %v236 = vld [vmem:[#allocation8 + $0x178] sm:$0xff]
    %v237 = vld [vmem:[#allocation8 + $0x180] sm:$0xff]
    %v238 = vld [vmem:[#allocation8 + $0x188] sm:$0xff]
    %v239 = vld [vmem:[#allocation8 + $0x190] sm:$0xff]
    %v240 = vld [vmem:[#allocation8 + $0x198] sm:$0xff]
    %v241 = vld [vmem:[#allocation8 + $0x1a0] sm:$0xff]
    %v242 = vld [vmem:[#allocation8 + $0x1a8] sm:$0xff]
    %v243 = vld [vmem:[#allocation8 + $0x1b0] sm:$0xff]
    %v244 = vld [vmem:[#allocation8 + $0x1b8] sm:$0xff]
    %v245 = vld [vmem:[#allocation8 + $0x1c0] sm:$0xff]
    %v246 = vld [vmem:[#allocation8 + $0x1c8] sm:$0xff]
    %v247 = vld [vmem:[#allocation8 + $0x1d0] sm:$0xff]
    %v248 = vld [vmem:[#allocation8 + $0x1d8] sm:$0xff]
    %v249 = vld [vmem:[#allocation8 + $0x1e0] sm:$0xff]
    %v250 = vld [vmem:[#allocation8 + $0x1e8] sm:$0xff]
    %v251 = vld [vmem:[#allocation8 + $0x1f0] sm:$0xff]
    %v252 = vld [vmem:[#allocation8 + $0x1f8] sm:$0xff]
    %v253 = vld [vmem:[#allocation10] sm:$0xf]
    %v255 = vlaneseq
    %v256 = vshrl.u32 %v255, 7
    %v257 = vsub.s32 0, %v256
    %v258 = vrot.slane %v253, %v257
    %v259 = vlaneseq
    %v260 = vshrl.u32 %v259, 7
    %v261 = vsub.s32 1, %v260
    %v262 = vrot.slane %v253, %v261
    %v263 = vlaneseq
    %v264 = vshrl.u32 %v263, 7
    %v265 = vsub.s32 2, %v264
    %v266 = vrot.slane %v253, %v265
    %v267 = vlaneseq
    %v268 = vshrl.u32 %v267, 7
    %v269 = vsub.s32 3, %v268
    %v270 = vrot.slane %v253, %v269
    %v339 = vunpack.c.l.b16 %v189
    %v340 = vunpack.c.h.b16 %v189
    %v341 = vunpack.c.l.b16 %v190
    %v342 = vunpack.c.h.b16 %v190
    %v343 = vunpack.c.l.b16 %v191
    %v344 = vunpack.c.h.b16 %v191
    %v345 = vunpack.c.l.b16 %v192
    %v346 = vunpack.c.h.b16 %v192
    %v347 = vunpack.c.l.b16 %v193
    %v348 = vunpack.c.h.b16 %v193
    %v349 = vunpack.c.l.b16 %v194
    %v350 = vunpack.c.h.b16 %v194
    %v351 = vunpack.c.l.b16 %v195
    %v352 = vunpack.c.h.b16 %v195
    %v353 = vunpack.c.l.b16 %v196
    %v354 = vunpack.c.h.b16 %v196
    %v355 = vunpack.c.l.b16 %v197
    %v356 = vunpack.c.h.b16 %v197
    %v357 = vunpack.c.l.b16 %v198
    %v358 = vunpack.c.h.b16 %v198
    %v359 = vunpack.c.l.b16 %v199
    %v360 = vunpack.c.h.b16 %v199
    %v361 = vunpack.c.l.b16 %v200
    %v362 = vunpack.c.h.b16 %v200
    %v363 = vunpack.c.l.b16 %v201
    %v364 = vunpack.c.h.b16 %v201
    %v365 = vunpack.c.l.b16 %v202
    %v366 = vunpack.c.h.b16 %v202
    %v367 = vunpack.c.l.b16 %v203
    %v368 = vunpack.c.h.b16 %v203
    %v369 = vunpack.c.l.b16 %v204
    %v370 = vunpack.c.h.b16 %v204
    %v371 = vunpack.c.l.b16 %v205
    %v372 = vunpack.c.h.b16 %v205
    %v373 = vunpack.c.l.b16 %v206
    %v374 = vunpack.c.h.b16 %v206
    %v375 = vunpack.c.l.b16 %v207
    %v376 = vunpack.c.h.b16 %v207
    %v377 = vunpack.c.l.b16 %v208
    %v378 = vunpack.c.h.b16 %v208
    %v379 = vunpack.c.l.b16 %v209
    %v380 = vunpack.c.h.b16 %v209
    %v381 = vunpack.c.l.b16 %v210
    %v382 = vunpack.c.h.b16 %v210
    %v383 = vunpack.c.l.b16 %v211
    %v384 = vunpack.c.h.b16 %v211
    %v385 = vunpack.c.l.b16 %v212
    %v386 = vunpack.c.h.b16 %v212
    %v387 = vunpack.c.l.b16 %v213
    %v388 = vunpack.c.h.b16 %v213
    %v389 = vunpack.c.l.b16 %v214
    %v390 = vunpack.c.h.b16 %v214
    %v391 = vunpack.c.l.b16 %v215
    %v392 = vunpack.c.h.b16 %v215
    %v393 = vunpack.c.l.b16 %v216
    %v394 = vunpack.c.h.b16 %v216
    %v395 = vunpack.c.l.b16 %v217
    %v396 = vunpack.c.h.b16 %v217
    %v397 = vunpack.c.l.b16 %v218
    %v398 = vunpack.c.h.b16 %v218
    %v399 = vunpack.c.l.b16 %v219
    %v400 = vunpack.c.h.b16 %v219
    %v401 = vunpack.c.l.b16 %v220
    %v402 = vunpack.c.h.b16 %v220
    %v403 = vunpack.c.l.b16 %v221
    %v404 = vunpack.c.h.b16 %v221
    %v405 = vunpack.c.l.b16 %v222
    %v406 = vunpack.c.h.b16 %v222
    %v407 = vunpack.c.l.b16 %v223
    %v408 = vunpack.c.h.b16 %v223
    %v409 = vunpack.c.l.b16 %v224
    %v410 = vunpack.c.h.b16 %v224
    %v411 = vunpack.c.l.b16 %v225
    %v412 = vunpack.c.h.b16 %v225
    %v413 = vunpack.c.l.b16 %v226
    %v414 = vunpack.c.h.b16 %v226
    %v415 = vunpack.c.l.b16 %v227
    %v416 = vunpack.c.h.b16 %v227
    %v417 = vunpack.c.l.b16 %v228
    %v418 = vunpack.c.h.b16 %v228
    %v419 = vunpack.c.l.b16 %v229
    %v420 = vunpack.c.h.b16 %v229
    %v421 = vunpack.c.l.b16 %v230
    %v422 = vunpack.c.h.b16 %v230
    %v423 = vunpack.c.l.b16 %v231
    %v424 = vunpack.c.h.b16 %v231
    %v425 = vunpack.c.l.b16 %v232
    %v426 = vunpack.c.h.b16 %v232
    %v427 = vunpack.c.l.b16 %v233
    %v428 = vunpack.c.h.b16 %v233
    %v429 = vunpack.c.l.b16 %v234
    %v430 = vunpack.c.h.b16 %v234
    %v431 = vunpack.c.l.b16 %v235
    %v432 = vunpack.c.h.b16 %v235
    %v433 = vunpack.c.l.b16 %v236
    %v434 = vunpack.c.h.b16 %v236
    %v435 = vunpack.c.l.b16 %v237
    %v436 = vunpack.c.h.b16 %v237
    %v437 = vunpack.c.l.b16 %v238
    %v438 = vunpack.c.h.b16 %v238
    %v439 = vunpack.c.l.b16 %v239
    %v440 = vunpack.c.h.b16 %v239
    %v441 = vunpack.c.l.b16 %v240
    %v442 = vunpack.c.h.b16 %v240
    %v443 = vunpack.c.l.b16 %v241
    %v444 = vunpack.c.h.b16 %v241
    %v445 = vunpack.c.l.b16 %v242
    %v446 = vunpack.c.h.b16 %v242
    %v447 = vunpack.c.l.b16 %v243
    %v448 = vunpack.c.h.b16 %v243
    %v449 = vunpack.c.l.b16 %v244
    %v450 = vunpack.c.h.b16 %v244
    %v451 = vunpack.c.l.b16 %v245
    %v452 = vunpack.c.h.b16 %v245
    %v453 = vunpack.c.l.b16 %v246
    %v454 = vunpack.c.h.b16 %v246
    %v455 = vunpack.c.l.b16 %v247
    %v456 = vunpack.c.h.b16 %v247
    %v457 = vunpack.c.l.b16 %v248
    %v458 = vunpack.c.h.b16 %v248
    %v459 = vunpack.c.l.b16 %v249
    %v460 = vunpack.c.h.b16 %v249
    %v461 = vunpack.c.l.b16 %v250
    %v462 = vunpack.c.h.b16 %v250
    %v463 = vunpack.c.l.b16 %v251
    %v464 = vunpack.c.h.b16 %v251
    %v465 = vunpack.c.l.b16 %v252
    %v466 = vunpack.c.h.b16 %v252
    %v467 = vpack.c.b16 %v343, %v339
    %v468 = vpack.c.b16 %v344, %v340
    %v469 = vpack.c.b16 %v345, %v341
    %v470 = vpack.c.b16 %v346, %v342
    %v471 = vpack.c.b16 %v351, %v347
    %v472 = vpack.c.b16 %v352, %v348
    %v473 = vpack.c.b16 %v353, %v349
    %v474 = vpack.c.b16 %v354, %v350
    %v475 = vpack.c.b16 %v359, %v355
    %v476 = vpack.c.b16 %v360, %v356
    %v477 = vpack.c.b16 %v361, %v357
    %v478 = vpack.c.b16 %v362, %v358
    %v479 = vpack.c.b16 %v367, %v363
    %v480 = vpack.c.b16 %v368, %v364
    %v481 = vpack.c.b16 %v369, %v365
    %v482 = vpack.c.b16 %v370, %v366
    %v483 = vpack.c.b16 %v375, %v371
    %v484 = vpack.c.b16 %v376, %v372
    %v485 = vpack.c.b16 %v377, %v373
    %v486 = vpack.c.b16 %v378, %v374
    %v487 = vpack.c.b16 %v383, %v379
    %v488 = vpack.c.b16 %v384, %v380
    %v489 = vpack.c.b16 %v385, %v381
    %v490 = vpack.c.b16 %v386, %v382
    %v491 = vpack.c.b16 %v391, %v387
    %v492 = vpack.c.b16 %v392, %v388
    %v493 = vpack.c.b16 %v393, %v389
    %v494 = vpack.c.b16 %v394, %v390
    %v495 = vpack.c.b16 %v399, %v395
    %v496 = vpack.c.b16 %v400, %v396
    %v497 = vpack.c.b16 %v401, %v397
    %v498 = vpack.c.b16 %v402, %v398
    %v499 = vpack.c.b16 %v407, %v403
    %v500 = vpack.c.b16 %v408, %v404
    %v501 = vpack.c.b16 %v409, %v405
    %v502 = vpack.c.b16 %v410, %v406
    %v503 = vpack.c.b16 %v415, %v411
    %v504 = vpack.c.b16 %v416, %v412
    %v505 = vpack.c.b16 %v417, %v413
    %v506 = vpack.c.b16 %v418, %v414
    %v507 = vpack.c.b16 %v423, %v419
    %v508 = vpack.c.b16 %v424, %v420
    %v509 = vpack.c.b16 %v425, %v421
    %v510 = vpack.c.b16 %v426, %v422
    %v511 = vpack.c.b16 %v431, %v427
    %v512 = vpack.c.b16 %v432, %v428
    %v513 = vpack.c.b16 %v433, %v429
    %v514 = vpack.c.b16 %v434, %v430
    %v515 = vpack.c.b16 %v439, %v435
    %v516 = vpack.c.b16 %v440, %v436
    %v517 = vpack.c.b16 %v441, %v437
    %v518 = vpack.c.b16 %v442, %v438
    %v519 = vpack.c.b16 %v447, %v443
    %v520 = vpack.c.b16 %v448, %v444
    %v521 = vpack.c.b16 %v449, %v445
    %v522 = vpack.c.b16 %v450, %v446
    %v523 = vpack.c.b16 %v455, %v451
    %v524 = vpack.c.b16 %v456, %v452
    %v525 = vpack.c.b16 %v457, %v453
    %v526 = vpack.c.b16 %v458, %v454
    %v527 = vpack.c.b16 %v463, %v459
    %v528 = vpack.c.b16 %v464, %v460
    %v529 = vpack.c.b16 %v465, %v461
    %v530 = vpack.c.b16 %v466, %v462
    %595 = vmatprep.subr.bf16.mxu0 %v468
    %596 = vmatpush1.bf16.msra.mxu0 %v467
    %597 = vmatprep.subr.bf16.mxu0 %v472
    %598 = vmatpush1.bf16.msra.mxu0 %v471
    %599 = vmatprep.subr.bf16.mxu0 %v476
    %600 = vmatpush1.bf16.msra.mxu0 %v475
    %601 = vmatprep.subr.bf16.mxu0 %v480
    %602 = vmatpush1.bf16.msra.mxu0 %v479
    %603 = vmatprep.subr.bf16.mxu0 %v484
    %604 = vmatpush1.bf16.msra.mxu0 %v483
    %605 = vmatprep.subr.bf16.mxu0 %v488
    %606 = vmatpush1.bf16.msra.mxu0 %v487
    %607 = vmatprep.subr.bf16.mxu0 %v492
    %608 = vmatpush1.bf16.msra.mxu0 %v491
    %609 = vmatprep.subr.bf16.mxu0 %v496
    %610 = vmatpush1.bf16.msra.mxu0 %v495
    %611 = vmatprep.subr.bf16.mxu0 %v500
    %612 = vmatpush1.bf16.msra.mxu0 %v499
    %613 = vmatprep.subr.bf16.mxu0 %v504
    %614 = vmatpush1.bf16.msra.mxu0 %v503
    %615 = vmatprep.subr.bf16.mxu0 %v508
    %616 = vmatpush1.bf16.msra.mxu0 %v507
    %617 = vmatprep.subr.bf16.mxu0 %v512
    %618 = vmatpush1.bf16.msra.mxu0 %v511
    %619 = vmatprep.subr.bf16.mxu0 %v516
    %620 = vmatpush1.bf16.msra.mxu0 %v515
    %621 = vmatprep.subr.bf16.mxu0 %v520
    %622 = vmatpush1.bf16.msra.mxu0 %v519
    %623 = vmatprep.subr.bf16.mxu0 %v524
    %624 = vmatpush1.bf16.msra.mxu0 %v523
    %625 = vmatprep.subr.bf16.mxu0 %v528
    %626 = vmatpush1.bf16.msra.mxu0 %v527
    %627 = vmatprep.mubr.bf16.mxu0 %v188
    %628 = vmatmul.mubr.bf16.gmra.mrb[0].mxu0 %v187
    %v629 = vpop.f32.mrb[0].mxu0
    %v630 = vadd.f32 %v258, %v629
    %v631 = vpop.f32.mrb[0].mxu0
    %v632 = vadd.f32 %v262, %v631
    %v633 = vpop.f32.mrb[0].mxu0
    %v634 = vpop.f32.mrb[0].mxu0
    %635 = vdwg.mxu0
    %636 = vmatprep.subr.bf16.mxu0 %v470
    %637 = vmatpush1.bf16.msra.mxu0 %v469
    %638 = vmatprep.subr.bf16.mxu0 %v474
    %639 = vmatpush1.bf16.msra.mxu0 %v473
    %640 = vmatprep.subr.bf16.mxu0 %v478
    %641 = vmatpush1.bf16.msra.mxu0 %v477
    %642 = vmatprep.subr.bf16.mxu0 %v482
    %643 = vmatpush1.bf16.msra.mxu0 %v481
    %644 = vmatprep.subr.bf16.mxu0 %v486
    %645 = vmatpush1.bf16.msra.mxu0 %v485
    %646 = vmatprep.subr.bf16.mxu0 %v490
    %647 = vmatpush1.bf16.msra.mxu0 %v489
    %648 = vmatprep.subr.bf16.mxu0 %v494
    %649 = vmatpush1.bf16.msra.mxu0 %v493
    %650 = vmatprep.subr.bf16.mxu0 %v498
    %651 = vmatpush1.bf16.msra.mxu0 %v497
    %652 = vmatprep.subr.bf16.mxu0 %v502
    %653 = vmatpush1.bf16.msra.mxu0 %v501
    %654 = vmatprep.subr.bf16.mxu0 %v506
    %655 = vmatpush1.bf16.msra.mxu0 %v505
    %656 = vmatprep.subr.bf16.mxu0 %v510
    %657 = vmatpush1.bf16.msra.mxu0 %v509
    %658 = vmatprep.subr.bf16.mxu0 %v514
    %659 = vmatpush1.bf16.msra.mxu0 %v513
    %660 = vmatprep.subr.bf16.mxu0 %v518
    %661 = vmatpush1.bf16.msra.mxu0 %v517
    %662 = vmatprep.subr.bf16.mxu0 %v522
    %663 = vmatpush1.bf16.msra.mxu0 %v521
    %664 = vmatprep.subr.bf16.mxu0 %v526
    %665 = vmatpush1.bf16.msra.mxu0 %v525
    %666 = vmatprep.subr.bf16.mxu0 %v530
    %667 = vmatpush1.bf16.msra.mxu0 %v529
    %668 = vmatprep.mubr.bf16.mxu0 %v188
    %669 = vmatmul.mubr.bf16.gmra.mrb[0].mxu0 %v187
    %v670 = vpop.f32.mrb[0].mxu0
    %v671 = vadd.f32 %v266, %v670
    %v672 = vpop.f32.mrb[0].mxu0
    %v673 = vadd.f32 %v270, %v672
    %v674 = vpop.f32.mrb[0].mxu0
    %v675 = vpop.f32.mrb[0].mxu0
    %676 = vdwg.mxu0
    %v677 = vmax.f32 %v630, 0.0
    %v678 = vmax.f32 %v632, 0.0
    %v679 = vmax.f32 %v671, 0.0
    %v680 = vmax.f32 %v673, 0.0
    %v681 = vpack.c.bf16 %v677, %v677
    %v682 = vpack.c.bf16 %v678, %v678
    %v683 = vpack.c.bf16 %v679, %v679
    %v684 = vpack.c.bf16 %v680, %v680
    %v685 = vld [vmem:[#allocation11] sm:$0xf]
    %v686 = vld [vmem:[#allocation11 + $0x4] sm:$0xf]
    %v687 = vld [vmem:[#allocation11 + $0x8] sm:$0xf]
    %v688 = vld [vmem:[#allocation11 + $0xc] sm:$0xf]
    %v689 = vld [vmem:[#allocation11 + $0x10] sm:$0xf]
    %v690 = vld [vmem:[#allocation11 + $0x14] sm:$0xf]
    %v691 = vld [vmem:[#allocation11 + $0x18] sm:$0xf]
    %v692 = vld [vmem:[#allocation11 + $0x1c] sm:$0xf]
    %v693 = vld [vmem:[#allocation11 + $0x20] sm:$0xf]
    %v694 = vld [vmem:[#allocation11 + $0x24] sm:$0xf]
    %v695 = vld [vmem:[#allocation11 + $0x28] sm:$0xf]
    %v696 = vld [vmem:[#allocation11 + $0x2c] sm:$0xf]
    %v697 = vld [vmem:[#allocation11 + $0x30] sm:$0xf]
    %v698 = vld [vmem:[#allocation11 + $0x34] sm:$0xf]
    %v699 = vld [vmem:[#allocation11 + $0x38] sm:$0xf]
    %v700 = vld [vmem:[#allocation11 + $0x3c] sm:$0xf]
    %v701 = vld [vmem:[#allocation11 + $0x40] sm:$0xf]
    %v702 = vld [vmem:[#allocation11 + $0x44] sm:$0xf]
    %v703 = vld [vmem:[#allocation11 + $0x48] sm:$0xf]
    %v704 = vld [vmem:[#allocation11 + $0x4c] sm:$0xf]
    %v705 = vld [vmem:[#allocation11 + $0x50] sm:$0xf]
    %v706 = vld [vmem:[#allocation11 + $0x54] sm:$0xf]
    %v707 = vld [vmem:[#allocation11 + $0x58] sm:$0xf]
    %v708 = vld [vmem:[#allocation11 + $0x5c] sm:$0xf]
    %v709 = vld [vmem:[#allocation11 + $0x60] sm:$0xf]
    %v710 = vld [vmem:[#allocation11 + $0x64] sm:$0xf]
    %v711 = vld [vmem:[#allocation11 + $0x68] sm:$0xf]
    %v712 = vld [vmem:[#allocation11 + $0x6c] sm:$0xf]
    %v713 = vld [vmem:[#allocation11 + $0x70] sm:$0xf]
    %v714 = vld [vmem:[#allocation11 + $0x74] sm:$0xf]
    %v715 = vld [vmem:[#allocation11 + $0x78] sm:$0xf]
    %v716 = vld [vmem:[#allocation11 + $0x7c] sm:$0xf]
    %v717 = vld [vmem:[#allocation11 + $0x80] sm:$0xf]
    %v718 = vld [vmem:[#allocation11 + $0x84] sm:$0xf]
    %v719 = vld [vmem:[#allocation11 + $0x88] sm:$0xf]
    %v720 = vld [vmem:[#allocation11 + $0x8c] sm:$0xf]
    %v721 = vld [vmem:[#allocation11 + $0x90] sm:$0xf]
    %v722 = vld [vmem:[#allocation11 + $0x94] sm:$0xf]
    %v723 = vld [vmem:[#allocation11 + $0x98] sm:$0xf]
    %v724 = vld [vmem:[#allocation11 + $0x9c] sm:$0xf]
    %v725 = vld [vmem:[#allocation11 + $0xa0] sm:$0xf]
    %v726 = vld [vmem:[#allocation11 + $0xa4] sm:$0xf]
    %v727 = vld [vmem:[#allocation11 + $0xa8] sm:$0xf]
    %v728 = vld [vmem:[#allocation11 + $0xac] sm:$0xf]
    %v729 = vld [vmem:[#allocation11 + $0xb0] sm:$0xf]
    %v730 = vld [vmem:[#allocation11 + $0xb4] sm:$0xf]
    %v731 = vld [vmem:[#allocation11 + $0xb8] sm:$0xf]
    %v732 = vld [vmem:[#allocation11 + $0xbc] sm:$0xf]
    %v733 = vld [vmem:[#allocation11 + $0xc0] sm:$0xf]
    %v734 = vld [vmem:[#allocation11 + $0xc4] sm:$0xf]
    %v735 = vld [vmem:[#allocation11 + $0xc8] sm:$0xf]
    %v736 = vld [vmem:[#allocation11 + $0xcc] sm:$0xf]
    %v737 = vld [vmem:[#allocation11 + $0xd0] sm:$0xf]
    %v738 = vld [vmem:[#allocation11 + $0xd4] sm:$0xf]
    %v739 = vld [vmem:[#allocation11 + $0xd8] sm:$0xf]
    %v740 = vld [vmem:[#allocation11 + $0xdc] sm:$0xf]
    %v741 = vld [vmem:[#allocation11 + $0xe0] sm:$0xf]
    %v742 = vld [vmem:[#allocation11 + $0xe4] sm:$0xf]
    %v743 = vld [vmem:[#allocation11 + $0xe8] sm:$0xf]
    %v744 = vld [vmem:[#allocation11 + $0xec] sm:$0xf]
    %v745 = vld [vmem:[#allocation11 + $0xf0] sm:$0xf]
    %v746 = vld [vmem:[#allocation11 + $0xf4] sm:$0xf]
    %v747 = vld [vmem:[#allocation11 + $0xf8] sm:$0xf]
    %v748 = vld [vmem:[#allocation11 + $0xfc] sm:$0xf]
    %v749 = vld [vmem:[#allocation13] sm:$0x1]
    %v751 = vlaneseq
    %v752 = vshrl.u32 %v751, 7
    %v753 = vsub.s32 0, %v752
    %v754 = vrot.slane %v749, %v753
    %v820 = vunpack.c.l.b16 %v685
    %v821 = vunpack.c.l.b16 %v686
    %v822 = vunpack.c.l.b16 %v687
    %v823 = vunpack.c.l.b16 %v688
    %v824 = vunpack.c.l.b16 %v689
    %v825 = vunpack.c.l.b16 %v690
    %v826 = vunpack.c.l.b16 %v691
    %v827 = vunpack.c.l.b16 %v692
    %v828 = vunpack.c.l.b16 %v693
    %v829 = vunpack.c.l.b16 %v694
    %v830 = vunpack.c.l.b16 %v695
    %v831 = vunpack.c.l.b16 %v696
    %v832 = vunpack.c.l.b16 %v697
    %v833 = vunpack.c.l.b16 %v698
    %v834 = vunpack.c.l.b16 %v699
    %v835 = vunpack.c.l.b16 %v700
    %v836 = vunpack.c.l.b16 %v701
    %v837 = vunpack.c.l.b16 %v702
    %v838 = vunpack.c.l.b16 %v703
    %v839 = vunpack.c.l.b16 %v704
    %v840 = vunpack.c.l.b16 %v705
    %v841 = vunpack.c.l.b16 %v706
    %v842 = vunpack.c.l.b16 %v707
    %v843 = vunpack.c.l.b16 %v708
    %v844 = vunpack.c.l.b16 %v709
    %v845 = vunpack.c.l.b16 %v710
    %v846 = vunpack.c.l.b16 %v711
    %v847 = vunpack.c.l.b16 %v712
    %v848 = vunpack.c.l.b16 %v713
    %v849 = vunpack.c.l.b16 %v714
    %v850 = vunpack.c.l.b16 %v715
    %v851 = vunpack.c.l.b16 %v716
    %v852 = vunpack.c.l.b16 %v717
    %v853 = vunpack.c.l.b16 %v718
    %v854 = vunpack.c.l.b16 %v719
    %v855 = vunpack.c.l.b16 %v720
    %v856 = vunpack.c.l.b16 %v721
    %v857 = vunpack.c.l.b16 %v722
    %v858 = vunpack.c.l.b16 %v723
    %v859 = vunpack.c.l.b16 %v724
    %v860 = vunpack.c.l.b16 %v725
    %v861 = vunpack.c.l.b16 %v726
    %v862 = vunpack.c.l.b16 %v727
    %v863 = vunpack.c.l.b16 %v728
    %v864 = vunpack.c.l.b16 %v729
    %v865 = vunpack.c.l.b16 %v730
    %v866 = vunpack.c.l.b16 %v731
    %v867 = vunpack.c.l.b16 %v732
    %v868 = vunpack.c.l.b16 %v733
    %v869 = vunpack.c.l.b16 %v734
    %v870 = vunpack.c.l.b16 %v735
    %v871 = vunpack.c.l.b16 %v736
    %v872 = vunpack.c.l.b16 %v737
    %v873 = vunpack.c.l.b16 %v738
    %v874 = vunpack.c.l.b16 %v739
    %v875 = vunpack.c.l.b16 %v740
    %v876 = vunpack.c.l.b16 %v741
    %v877 = vunpack.c.l.b16 %v742
    %v878 = vunpack.c.l.b16 %v743
    %v879 = vunpack.c.l.b16 %v744
    %v880 = vunpack.c.l.b16 %v745
    %v881 = vunpack.c.l.b16 %v746
    %v882 = vunpack.c.l.b16 %v747
    %v883 = vunpack.c.l.b16 %v748
    %v884 = vpack.c.b16 %v821, %v820
    %v885 = vpack.c.b16 %v823, %v822
    %v886 = vpack.c.b16 %v825, %v824
    %v887 = vpack.c.b16 %v827, %v826
    %v888 = vpack.c.b16 %v829, %v828
    %v889 = vpack.c.b16 %v831, %v830
    %v890 = vpack.c.b16 %v833, %v832
    %v891 = vpack.c.b16 %v835, %v834
    %v892 = vpack.c.b16 %v837, %v836
    %v893 = vpack.c.b16 %v839, %v838
    %v894 = vpack.c.b16 %v841, %v840
    %v895 = vpack.c.b16 %v843, %v842
    %v896 = vpack.c.b16 %v845, %v844
    %v897 = vpack.c.b16 %v847, %v846
    %v898 = vpack.c.b16 %v849, %v848
    %v899 = vpack.c.b16 %v851, %v850
    %v900 = vpack.c.b16 %v853, %v852
    %v901 = vpack.c.b16 %v855, %v854
    %v902 = vpack.c.b16 %v857, %v856
    %v903 = vpack.c.b16 %v859, %v858
    %v904 = vpack.c.b16 %v861, %v860
    %v905 = vpack.c.b16 %v863, %v862
    %v906 = vpack.c.b16 %v865, %v864
    %v907 = vpack.c.b16 %v867, %v866
    %v908 = vpack.c.b16 %v869, %v868
    %v909 = vpack.c.b16 %v871, %v870
    %v910 = vpack.c.b16 %v873, %v872
    %v911 = vpack.c.b16 %v875, %v874
    %v912 = vpack.c.b16 %v877, %v876
    %v913 = vpack.c.b16 %v879, %v878
    %v914 = vpack.c.b16 %v881, %v880
    %v915 = vpack.c.b16 %v883, %v882
    %948 = vmatprep.subr.bf16.mxu0 0
    %949 = vmatpush1.bf16.msra.mxu0 %v884
    %950 = vmatprep.subr.bf16.mxu0 0
    %951 = vmatpush1.bf16.msra.mxu0 %v885
    %952 = vmatprep.subr.bf16.mxu0 0
    %953 = vmatpush1.bf16.msra.mxu0 %v886
    %954 = vmatprep.subr.bf16.mxu0 0
    %955 = vmatpush1.bf16.msra.mxu0 %v887
    %956 = vmatprep.subr.bf16.mxu0 0
    %957 = vmatpush1.bf16.msra.mxu0 %v888
    %958 = vmatprep.subr.bf16.mxu0 0
    %959 = vmatpush1.bf16.msra.mxu0 %v889
    %960 = vmatprep.subr.bf16.mxu0 0
    %961 = vmatpush1.bf16.msra.mxu0 %v890
    %962 = vmatprep.subr.bf16.mxu0 0
    %963 = vmatpush1.bf16.msra.mxu0 %v891
    %964 = vmatprep.subr.bf16.mxu0 0
    %965 = vmatpush1.bf16.msra.mxu0 %v892
    %966 = vmatprep.subr.bf16.mxu0 0
    %967 = vmatpush1.bf16.msra.mxu0 %v893
    %968 = vmatprep.subr.bf16.mxu0 0
    %969 = vmatpush1.bf16.msra.mxu0 %v894
    %970 = vmatprep.subr.bf16.mxu0 0
    %971 = vmatpush1.bf16.msra.mxu0 %v895
    %972 = vmatprep.subr.bf16.mxu0 0
    %973 = vmatpush1.bf16.msra.mxu0 %v896
    %974 = vmatprep.subr.bf16.mxu0 0
    %975 = vmatpush1.bf16.msra.mxu0 %v897
    %976 = vmatprep.subr.bf16.mxu0 0
    %977 = vmatpush1.bf16.msra.mxu0 %v898
    %978 = vmatprep.subr.bf16.mxu0 0
    %979 = vmatpush1.bf16.msra.mxu0 %v899
    %980 = vmatprep.mubr.bf16.mxu0 %v682
    %981 = vmatmul.mubr.bf16.gmra.mrb[0].mxu0 %v681
    %v982 = vpop.f32.mrb[0].mxu0
    %v983 = vadd.f32 %v754, %v982
    %v984 = vpop.f32.mrb[0].mxu0
    %v985 = vpop.f32.mrb[0].mxu0
    %v986 = vpop.f32.mrb[0].mxu0
    %987 = vdwg.mxu0
    %988 = vmatprep.subr.bf16.mxu0 0
    %989 = vmatpush1.bf16.msra.mxu0 %v900
    %990 = vmatprep.subr.bf16.mxu0 0
    %991 = vmatpush1.bf16.msra.mxu0 %v901
    %992 = vmatprep.subr.bf16.mxu0 0
    %993 = vmatpush1.bf16.msra.mxu0 %v902
    %994 = vmatprep.subr.bf16.mxu0 0
    %995 = vmatpush1.bf16.msra.mxu0 %v903
    %996 = vmatprep.subr.bf16.mxu0 0
    %997 = vmatpush1.bf16.msra.mxu0 %v904
    %998 = vmatprep.subr.bf16.mxu0 0
    %999 = vmatpush1.bf16.msra.mxu0 %v905
    %1000 = vmatprep.subr.bf16.mxu0 0
    %1001 = vmatpush1.bf16.msra.mxu0 %v906
    %1002 = vmatprep.subr.bf16.mxu0 0
    %1003 = vmatpush1.bf16.msra.mxu0 %v907
    %1004 = vmatprep.subr.bf16.mxu0 0
    %1005 = vmatpush1.bf16.msra.mxu0 %v908
    %1006 = vmatprep.subr.bf16.mxu0 0
    %1007 = vmatpush1.bf16.msra.mxu0 %v909
    %1008 = vmatprep.subr.bf16.mxu0 0
    %1009 = vmatpush1.bf16.msra.mxu0 %v910
    %1010 = vmatprep.subr.bf16.mxu0 0
    %1011 = vmatpush1.bf16.msra.mxu0 %v911
    %1012 = vmatprep.subr.bf16.mxu0 0
    %1013 = vmatpush1.bf16.msra.mxu0 %v912
    %1014 = vmatprep.subr.bf16.mxu0 0
    %1015 = vmatpush1.bf16.msra.mxu0 %v913
    %1016 = vmatprep.subr.bf16.mxu0 0
    %1017 = vmatpush1.bf16.msra.mxu0 %v914
    %1018 = vmatprep.subr.bf16.mxu0 0
    %1019 = vmatpush1.bf16.msra.mxu0 %v915
    %1020 = vmatprep.mubr.bf16.mxu0 %v684
    %1021 = vmatmul.mubr.bf16.gmra.mrb[0].mxu0 %v683
    %v1022 = vpop.f32.mrb[0].mxu0
    %v1023 = vadd.f32 %v983, %v1022
    %v1024 = vpop.f32.mrb[0].mxu0
    %v1025 = vpop.f32.mrb[0].mxu0
    %v1026 = vpop.f32.mrb[0].mxu0
    %1027 = vdwg.mxu0
    %1028 = vst [vmem:[#allocation14] sm:$0xff] %v1023
    // Predicated region
    $region58: #{tpu_custom_call.1} parent=1 // pred_check
      _
    $region59: #{tpu_custom_call.1} parent=1 // pred_check_branch
      %1030 = sbr.rel (0) target = $region61
    $region60: #{tpu_custom_call.1} parent=1 // pred_region
      %s1032 = ssub.s32 128, 128
      %1033 = vsyncadd [#allocation4], %s1032
      %s1035 = sshll.u32 [#allocation14], 4
      %s1036 = int_to_ptr.vmem [resolvable:$true] %s1035
      %1038 = dma.vmem_to_hbm [thread:$0]  %s1036, 128, %s7, [#allocation4]
    $region61: #{tpu_custom_call.1} parent=1 // pred_fallthru
      _
    // Predicated region
    $region62: #{tpu_custom_call.1} parent=1 // pred_check
      _
    $region63: #{tpu_custom_call.1} parent=1 // pred_check_branch
      %1040 = sbr.rel (0) target = $region65
    $region64: #{tpu_custom_call.1} parent=1 // pred_region
      %1041 = dma.done [#allocation4], 128
    $region65: #{tpu_custom_call.1} parent=1 // pred_fallthru
      _
    %1042 = vsyncpa [#allocation3], 1
    %1043 = vsyncpa [#allocation6], 1
    %1044 = vsyncpa [#allocation9], 1
    %1045 = vsyncpa [#allocation12], 1
    %1046 = vsyncpa [#allocation4], 1

</llo_original>
